<compile_context>
chip_gen: v7x
topology: tpu7x:2x2x1
jax: 0.10.0
libtpu: 0.0.40
codegen_flags: <defaults>
</compile_context>

<pallas_src>
import functools

import jax
import jax.numpy as jnp
from jax import lax
from jax.experimental import pallas as pl
from jax.experimental.pallas import tpu as pltpu

# ---------------- model hyper-parameters (small, deterministic) -------------
BATCH = 8          # batch size (multiple of the 8-row f32 sublane tile)
SEQ = 8            # sequence length
HIDDEN = 32        # GPT hidden size
VOCAB = 64         # vocab size
N_KEYS = 128       # datastore entries
NUM_LABELS = 2     # sentiment labels
K_NEIGHBORS = 8    # k
LAMBDA_KNN = 0.25  # k-NN interpolation weight
KNN_TEMP = 10.0    # k-NN retrieval temperature


# ------------------------------- Pallas kernel ------------------------------
def _knn_classifier_kernel(ids_ref, mask_ref,                  # int32 [BB, S]
                           emb_ref, wg_ref, bg_ref,            # VMEM weights
                           keyst_ref, keynorm_ref, valsc_ref,
                           wc_ref, bc_ref,
                           logits_ref,                         # output [BB, L]
                           *, seq, vocab, k, lam):
    bblk = ids_ref.shape[0]

    # ---- last-valid-token selection + embedding gather (fully vectorized) --
    mask_f = mask_ref[...].astype(jnp.float32)                       # [BB, S]
    cnt = jnp.sum(mask_f, axis=-1, keepdims=True)                    # [BB, 1]
    # all-padding row wraps to the last position (matches JAX negative index)
    last = jnp.where(cnt > 0.5, cnt - 1.0, jnp.float32(seq - 1))     # [BB, 1]
    iota_s = lax.broadcasted_iota(jnp.int32, (bblk, seq), 1).astype(jnp.float32)
    onehot_s = (iota_s == last).astype(jnp.float32)                  # [BB, S]
    tok = jnp.sum(ids_ref[...].astype(jnp.float32) * onehot_s,
                  axis=-1, keepdims=True)                            # [BB, 1]
    iota_v = lax.broadcasted_iota(jnp.int32, (bblk, vocab), 1).astype(jnp.float32)
    onehot_v = (iota_v == tok).astype(jnp.float32)                   # [BB, V]
    e = jnp.dot(onehot_v, emb_ref[...],
                preferred_element_type=jnp.float32)                  # [BB, D]

    # ---- GPT stand-in readout projection (MXU) ------------------------------
    q = jnp.tanh(
        jnp.dot(e, wg_ref[...], preferred_element_type=jnp.float32)
        + bg_ref[...]
    )                                                                # [BB, D]

    # ---- classifier branch on q (independent of the kNN branch; the compiler
    #      schedules it under the serial top-k chain) --------------------------
    logits_q = jnp.dot(q, wc_ref[...],
                       preferred_element_type=jnp.float32)           # [BB, L]

    # ---- kNN branch ----------------------------------------------------------
    # keys^T carries 2/T and keynorm carries 1/T (datastore-side precompute),
    # and the per-row ||q||^2/T shift is dropped, so:
    scores = (jnp.dot(q, keyst_ref[...], preferred_element_type=jnp.float32)
              - keynorm_ref[...])                                    # [BB, N]

    # Top-k selection via k iterated masked maxima (k small & static).
    # TODO(synk): ties are kept via `>= thr` (may retain >k equal-score
    # entries), unlike lax.top_k's deterministic-index tie-breaking.
    neg_inf = jnp.float32(-jnp.inf)
    rem = scores
    m0 = None
    thr = None
    for i in range(k):
        thr = jnp.max(rem, axis=-1, keepdims=True)
        if i == 0:
            m0 = thr                       # global row max -> softmax shift
        rem = jnp.where(rem >= thr, neg_inf, rem)

    masked = jnp.where(scores >= thr, scores, neg_inf)
    w_un = jnp.exp(masked - m0)            # unnormalized weights; exp(-inf)=0

    # Deferred softmax normalization: matmul on unnormalized weights against
    # the Wc-folded values, then scale the tiny [BB, L] result.
    knn_un = jnp.dot(w_un, valsc_ref[...],
                     preferred_element_type=jnp.float32)             # [BB, L]
    inv_denom = pl.reciprocal(jnp.sum(w_un, axis=-1, keepdims=True),
                              approx=True)                           # [BB, 1]

    # Dropout(0.3) is identity in eval mode; training-mode dropout not emitted.
    logits_ref[...] = ((1.0 - lam) * logits_q
                       + lam * (knn_un * inv_denom)
                       + bc_ref[...])                                # [BB, L]


def knn_sentiment_forward(input_ids, attention_mask, params,
                          *, k=K_NEIGHBORS, lam=LAMBDA_KNN, temp=KNN_TEMP):
    """Forward pass of KNNSentimentClassifier (use_knn=True, eval mode)."""
    emb = params["embedding"].astype(jnp.float32)            # [V, D]
    wg, bg = params["wg"], params["bg"]                       # [D, D], [1, D]
    keys, vals = params["keys"], params["values"]             # [N, D], [N, D]
    wc, bc = params["wc"], params["bc"]                       # [D, L], [1, L]

    b, s = input_ids.shape
    v, d = emb.shape
    n = keys.shape[0]
    nl = wc.shape[1]

    # Datastore-side precompute (stored once alongside the datastore in a real
    # deployment, not recomputed per call):
    keys_t = keys.T * (2.0 / temp)                            # [D, N]
    key_norms = (jnp.sum(keys * keys, axis=-1) / temp)[None, :]   # [1, N]
    vals_c = vals @ wc                                        # [N, L] folded values

    # Batch-block grid axis ("parallel": v7x splits it across TensorCores).
    if b % 8 == 0:
        bblk = min(b, 128)
        while b % bblk != 0:
            bblk -= 8
    else:
        bblk = b
    grid = (b // bblk,)

    kernel = functools.partial(_knn_classifier_kernel,
                               seq=s, vocab=v, k=k, lam=lam)

    def const(shape):
        return pl.BlockSpec(shape, lambda i: (0,) * len(shape))

    return pl.pallas_call(
        kernel,
        out_shape=jax.ShapeDtypeStruct((b, nl), jnp.float32),
        grid_spec=pltpu.PrefetchScalarGridSpec(
            num_scalar_prefetch=0,
            grid=grid,
            in_specs=[
                pl.BlockSpec((bblk, s), lambda i: (i, 0)),    # input_ids
                pl.BlockSpec((bblk, s), lambda i: (i, 0)),    # attention_mask
                const((v, d)),     # embedding table
                const((d, d)),     # Wg
                const((1, d)),     # bg
                const((d, n)),     # keys^T (pre-scaled by 2/T)
                const((1, n)),     # key squared norms (pre-scaled by 1/T)
                const((n, nl)),    # values @ Wc (classifier folded in)
                const((d, nl)),    # classifier W
                const((1, nl)),    # classifier b
            ],
            out_specs=pl.BlockSpec((bblk, nl), lambda i: (i, 0)),
        ),
        compiler_params=pltpu.CompilerParams(
            dimension_semantics=("parallel",)),
    )(input_ids.astype(jnp.int32), attention_mask.astype(jnp.int32),
      emb, wg, bg, keys_t, key_norms, vals_c, wc, bc)


# ------------------------------ pure-JAX reference ---------------------------
def reference_forward(input_ids, attention_mask, params,
                      *, k=K_NEIGHBORS, lam=LAMBDA_KNN, temp=KNN_TEMP):
    emb_table = params["embedding"]
    b = input_ids.shape[0]
    tok_emb = jnp.take(emb_table, input_ids, axis=0)
    last_idx = jnp.sum(attention_mask, axis=-1).astype(jnp.int32) - 1
    e = tok_emb[jnp.arange(b), last_idx]

    q = jnp.tanh(e @ params["wg"] + params["bg"])
    keys, vals = params["keys"], params["values"]
    dist2 = (jnp.sum(q * q, -1, keepdims=True)
             + jnp.sum(keys * keys, -1)[None, :]
             - 2.0 * q @ keys.T)
    scores = -dist2 / temp
    topk_scores, topk_idx = lax.top_k(scores, k)
    w = jax.nn.softmax(topk_scores, axis=-1)
    knn_h = jnp.einsum("bk,bkd->bd", w, vals[topk_idx])
    h_aug = (1.0 - lam) * q + lam * knn_h
    return h_aug @ params["wc"] + params["bc"]


# ------------------------------------ main ----------------------------------
if __name__ == "__main__":
    key = jax.random.PRNGKey(0)
    ks = jax.random.split(key, 8)

    params = {
        "embedding": jax.random.normal(ks[0], (VOCAB, HIDDEN), jnp.float32) * 0.1,
        "wg": jax.random.normal(ks[1], (HIDDEN, HIDDEN), jnp.float32) * 0.1,
        "bg": jax.random.normal(ks[2], (1, HIDDEN), jnp.float32) * 0.01,
        "keys": jax.random.normal(ks[3], (N_KEYS, HIDDEN), jnp.float32),
        "values": jax.random.normal(ks[4], (N_KEYS, HIDDEN), jnp.float32),
        "wc": jax.random.normal(ks[5], (HIDDEN, NUM_LABELS), jnp.float32) * 0.1,
        "bc": jax.random.normal(ks[6], (1, NUM_LABELS), jnp.float32) * 0.01,
    }

    input_ids = jax.random.randint(ks[7], (BATCH, SEQ), 0, VOCAB, jnp.int32)
    # attention_mask: varied right-padding per row.
    lengths = jnp.array([SEQ, SEQ - 3, SEQ - 1, 2, SEQ, 5, 1, SEQ - 2],
                        dtype=jnp.int32)
    attention_mask = (jnp.arange(SEQ)[None, :] < lengths[:, None]).astype(jnp.int32)

    logits = knn_sentiment_forward(input_ids, attention_mask, params)
    logits = jax.block_until_ready(logits)

    ref = reference_forward(input_ids, attention_mask, params)
    if not jnp.allclose(logits, ref, atol=1e-4, rtol=1e-4):
        raise AssertionError(f"mismatch:\n{logits}\nvs\n{ref}")

    print("KERNEL_OK")
</pallas_src>

<mosaic_0001>
module attributes {stable_mosaic.version = 11 : i64} {
  func.func @_knn_classifier_kernel(%arg0: i32, %arg1: memref<8x8xi32, #tpu.memory_space<vmem>>, %arg2: memref<8x8xi32, #tpu.memory_space<vmem>>, %arg3: memref<64x32xf32, #tpu.memory_space<vmem>>, %arg4: memref<32x32xf32, #tpu.memory_space<vmem>>, %arg5: memref<1x32xf32, #tpu.memory_space<vmem>>, %arg6: memref<32x128xf32, #tpu.memory_space<vmem>>, %arg7: memref<1x128xf32, #tpu.memory_space<vmem>>, %arg8: memref<128x2xf32, #tpu.memory_space<vmem>>, %arg9: memref<32x2xf32, #tpu.memory_space<vmem>>, %arg10: memref<1x2xf32, #tpu.memory_space<vmem>>, %arg11: memref<8x2xf32, #tpu.memory_space<vmem>>) attributes {dimension_semantics = [#tpu.dimension_semantics<parallel>], iteration_bounds = array<i64: 1>, scalar_prefetch = 0 : i64, scratch_operands = 0 : i64, tpu.core_type = #tpu.core_type<tc>, window_params = [{transform_indices = @transform_0, window_bounds = array<i64: 8, 8>}, {transform_indices = @transform_1, window_bounds = array<i64: 8, 8>}, {pipeline_mode = #tpu.pipeline_mode<synchronous>, transform_indices = @transform_2, window_bounds = array<i64: 64, 32>}, {pipeline_mode = #tpu.pipeline_mode<synchronous>, transform_indices = @transform_3, window_bounds = array<i64: 32, 32>}, {pipeline_mode = #tpu.pipeline_mode<synchronous>, transform_indices = @transform_4, window_bounds = array<i64: 1, 32>}, {pipeline_mode = #tpu.pipeline_mode<synchronous>, transform_indices = @transform_5, window_bounds = array<i64: 32, 128>}, {pipeline_mode = #tpu.pipeline_mode<synchronous>, transform_indices = @transform_6, window_bounds = array<i64: 1, 128>}, {pipeline_mode = #tpu.pipeline_mode<synchronous>, transform_indices = @transform_7, window_bounds = array<i64: 128, 2>}, {pipeline_mode = #tpu.pipeline_mode<synchronous>, transform_indices = @transform_8, window_bounds = array<i64: 32, 2>}, {pipeline_mode = #tpu.pipeline_mode<synchronous>, transform_indices = @transform_9, window_bounds = array<i64: 1, 2>}, {transform_indices = @transform_10, window_bounds = array<i64: 8, 2>}]} {
    %c0 = arith.constant 0 : index
    %c0_0 = arith.constant 0 : index
    %0 = vector.load %arg2[%c0, %c0_0] : memref<8x8xi32, #tpu.memory_space<vmem>>, vector<8x8xi32>
    %1 = arith.sitofp %0 : vector<8x8xi32> to vector<8x8xf32>
    %cst = arith.constant dense<0.000000e+00> : vector<8xf32>
    %2 = vector.multi_reduction <add>, %1, %cst [1] : vector<8x8xf32> to vector<8xf32>
    %3 = vector.shape_cast %2 : vector<8xf32> to vector<8x1xf32>
    %cst_1 = arith.constant 5.000000e-01 : f32
    %4 = vector.broadcast %cst_1 : f32 to vector<8x1xf32>
    %5 = arith.cmpf ogt, %3, %4 : vector<8x1xf32>
    %cst_2 = arith.constant 1.000000e+00 : f32
    %6 = vector.broadcast %cst_2 : f32 to vector<8x1xf32>
    %7 = arith.subf %3, %6 : vector<8x1xf32>
    %cst_3 = arith.constant 7.000000e+00 : f32
    %8 = vector.broadcast %cst_3 : f32 to vector<8x1xf32>
    %9 = arith.select %5, %7, %8 : vector<8x1xi1>, vector<8x1xf32>
    %10 = tpu.iota {dimensions = array<i32: 1>} : vector<8x8xi32>
    %11 = arith.sitofp %10 : vector<8x8xi32> to vector<8x8xf32>
    %12 = vector.broadcast %9 : vector<8x1xf32> to vector<8x8xf32>
    %13 = arith.cmpf oeq, %11, %12 : vector<8x8xf32>
    %14 = arith.extui %13 : vector<8x8xi1> to vector<8x8xi32>
    %15 = arith.sitofp %14 : vector<8x8xi32> to vector<8x8xf32>
    %c0_4 = arith.constant 0 : index
    %c0_5 = arith.constant 0 : index
    %16 = vector.load %arg1[%c0_4, %c0_5] : memref<8x8xi32, #tpu.memory_space<vmem>>, vector<8x8xi32>
    %17 = arith.sitofp %16 : vector<8x8xi32> to vector<8x8xf32>
    %18 = arith.mulf %17, %15 : vector<8x8xf32>
    %cst_6 = arith.constant dense<0.000000e+00> : vector<8xf32>
    %19 = vector.multi_reduction <add>, %18, %cst_6 [1] : vector<8x8xf32> to vector<8xf32>
    %20 = vector.shape_cast %19 : vector<8xf32> to vector<8x1xf32>
    %21 = tpu.iota {dimensions = array<i32: 1>} : vector<8x64xi32>
    %22 = arith.sitofp %21 : vector<8x64xi32> to vector<8x64xf32>
    %23 = vector.broadcast %20 : vector<8x1xf32> to vector<8x64xf32>
    %24 = arith.cmpf oeq, %22, %23 : vector<8x64xf32>
    %25 = arith.extui %24 : vector<8x64xi1> to vector<8x64xi32>
    %26 = arith.sitofp %25 : vector<8x64xi32> to vector<8x64xf32>
    %c0_7 = arith.constant 0 : index
    %c0_8 = arith.constant 0 : index
    %27 = vector.load %arg3[%c0_7, %c0_8] : memref<64x32xf32, #tpu.memory_space<vmem>>, vector<64x32xf32>
    %cst_9 = arith.constant dense<0.000000e+00> : vector<8x32xf32>
    %28 = tpu.matmul %26, %27, %cst_9 {dimension_numbers = #tpu.dot_dimension_numbers<[1], [0], [0], [1], [0, 0, 1, 1], [], []>} : vector<8x64xf32>, vector<64x32xf32>, vector<8x32xf32> -> vector<8x32xf32>
    %c0_10 = arith.constant 0 : index
    %c0_11 = arith.constant 0 : index
    %29 = vector.load %arg4[%c0_10, %c0_11] : memref<32x32xf32, #tpu.memory_space<vmem>>, vector<32x32xf32>
    %cst_12 = arith.constant dense<0.000000e+00> : vector<8x32xf32>
    %30 = tpu.matmul %28, %29, %cst_12 {dimension_numbers = #tpu.dot_dimension_numbers<[1], [0], [0], [1], [0, 0, 1, 1], [], []>} : vector<8x32xf32>, vector<32x32xf32>, vector<8x32xf32> -> vector<8x32xf32>
    %c0_13 = arith.constant 0 : index
    %c0_14 = arith.constant 0 : index
    %31 = vector.load %arg5[%c0_13, %c0_14] : memref<1x32xf32, #tpu.memory_space<vmem>>, vector<1x32xf32>
    %32 = vector.broadcast %31 : vector<1x32xf32> to vector<8x32xf32>
    %33 = arith.addf %30, %32 : vector<8x32xf32>
    %34 = math.tanh %33 : vector<8x32xf32>
    %c0_15 = arith.constant 0 : index
    %c0_16 = arith.constant 0 : index
    %35 = vector.load %arg9[%c0_15, %c0_16] : memref<32x2xf32, #tpu.memory_space<vmem>>, vector<32x2xf32>
    %cst_17 = arith.constant dense<0.000000e+00> : vector<8x2xf32>
    %36 = tpu.matmul %34, %35, %cst_17 {dimension_numbers = #tpu.dot_dimension_numbers<[1], [0], [0], [1], [0, 0, 1, 1], [], []>} : vector<8x32xf32>, vector<32x2xf32>, vector<8x2xf32> -> vector<8x2xf32>
    %c0_18 = arith.constant 0 : index
    %c0_19 = arith.constant 0 : index
    %37 = vector.load %arg6[%c0_18, %c0_19] : memref<32x128xf32, #tpu.memory_space<vmem>>, vector<32x128xf32>
    %cst_20 = arith.constant dense<0.000000e+00> : vector<8x128xf32>
    %38 = tpu.matmul %34, %37, %cst_20 {dimension_numbers = #tpu.dot_dimension_numbers<[1], [0], [0], [1], [0, 0, 1, 1], [], []>} : vector<8x32xf32>, vector<32x128xf32>, vector<8x128xf32> -> vector<8x128xf32>
    %c0_21 = arith.constant 0 : index
    %c0_22 = arith.constant 0 : index
    %39 = vector.load %arg7[%c0_21, %c0_22] : memref<1x128xf32, #tpu.memory_space<vmem>>, vector<1x128xf32>
    %40 = vector.broadcast %39 : vector<1x128xf32> to vector<8x128xf32>
    %41 = arith.subf %38, %40 : vector<8x128xf32>
    %cst_23 = arith.constant dense<0xFF800000> : vector<8xf32>
    %42 = vector.multi_reduction <maximumf>, %41, %cst_23 [1] : vector<8x128xf32> to vector<8xf32>
    %43 = vector.shape_cast %42 : vector<8xf32> to vector<8x1xf32>
    %44 = vector.broadcast %43 : vector<8x1xf32> to vector<8x128xf32>
    %45 = arith.cmpf oge, %41, %44 : vector<8x128xf32>
    %cst_24 = arith.constant 0xFF800000 : f32
    %46 = vector.broadcast %cst_24 : f32 to vector<8x128xf32>
    %47 = arith.select %45, %46, %41 : vector<8x128xi1>, vector<8x128xf32>
    %cst_25 = arith.constant dense<0xFF800000> : vector<8xf32>
    %48 = vector.multi_reduction <maximumf>, %47, %cst_25 [1] : vector<8x128xf32> to vector<8xf32>
    %49 = vector.shape_cast %48 : vector<8xf32> to vector<8x1xf32>
    %50 = vector.broadcast %49 : vector<8x1xf32> to vector<8x128xf32>
    %51 = arith.cmpf oge, %47, %50 : vector<8x128xf32>
    %cst_26 = arith.constant 0xFF800000 : f32
    %52 = vector.broadcast %cst_26 : f32 to vector<8x128xf32>
    %53 = arith.select %51, %52, %47 : vector<8x128xi1>, vector<8x128xf32>
    %cst_27 = arith.constant dense<0xFF800000> : vector<8xf32>
    %54 = vector.multi_reduction <maximumf>, %53, %cst_27 [1] : vector<8x128xf32> to vector<8xf32>
    %55 = vector.shape_cast %54 : vector<8xf32> to vector<8x1xf32>
    %56 = vector.broadcast %55 : vector<8x1xf32> to vector<8x128xf32>
    %57 = arith.cmpf oge, %53, %56 : vector<8x128xf32>
    %cst_28 = arith.constant 0xFF800000 : f32
    %58 = vector.broadcast %cst_28 : f32 to vector<8x128xf32>
    %59 = arith.select %57, %58, %53 : vector<8x128xi1>, vector<8x128xf32>
    %cst_29 = arith.constant dense<0xFF800000> : vector<8xf32>
    %60 = vector.multi_reduction <maximumf>, %59, %cst_29 [1] : vector<8x128xf32> to vector<8xf32>
    %61 = vector.shape_cast %60 : vector<8xf32> to vector<8x1xf32>
    %62 = vector.broadcast %61 : vector<8x1xf32> to vector<8x128xf32>
    %63 = arith.cmpf oge, %59, %62 : vector<8x128xf32>
    %cst_30 = arith.constant 0xFF800000 : f32
    %64 = vector.broadcast %cst_30 : f32 to vector<8x128xf32>
    %65 = arith.select %63, %64, %59 : vector<8x128xi1>, vector<8x128xf32>
    %cst_31 = arith.constant dense<0xFF800000> : vector<8xf32>
    %66 = vector.multi_reduction <maximumf>, %65, %cst_31 [1] : vector<8x128xf32> to vector<8xf32>
    %67 = vector.shape_cast %66 : vector<8xf32> to vector<8x1xf32>
    %68 = vector.broadcast %67 : vector<8x1xf32> to vector<8x128xf32>
    %69 = arith.cmpf oge, %65, %68 : vector<8x128xf32>
    %cst_32 = arith.constant 0xFF800000 : f32
    %70 = vector.broadcast %cst_32 : f32 to vector<8x128xf32>
    %71 = arith.select %69, %70, %65 : vector<8x128xi1>, vector<8x128xf32>
    %cst_33 = arith.constant dense<0xFF800000> : vector<8xf32>
    %72 = vector.multi_reduction <maximumf>, %71, %cst_33 [1] : vector<8x128xf32> to vector<8xf32>
    %73 = vector.shape_cast %72 : vector<8xf32> to vector<8x1xf32>
    %74 = vector.broadcast %73 : vector<8x1xf32> to vector<8x128xf32>
    %75 = arith.cmpf oge, %71, %74 : vector<8x128xf32>
    %cst_34 = arith.constant 0xFF800000 : f32
    %76 = vector.broadcast %cst_34 : f32 to vector<8x128xf32>
    %77 = arith.select %75, %76, %71 : vector<8x128xi1>, vector<8x128xf32>
    %cst_35 = arith.constant dense<0xFF800000> : vector<8xf32>
    %78 = vector.multi_reduction <maximumf>, %77, %cst_35 [1] : vector<8x128xf32> to vector<8xf32>
    %79 = vector.shape_cast %78 : vector<8xf32> to vector<8x1xf32>
    %80 = vector.broadcast %79 : vector<8x1xf32> to vector<8x128xf32>
    %81 = arith.cmpf oge, %77, %80 : vector<8x128xf32>
    %cst_36 = arith.constant 0xFF800000 : f32
    %82 = vector.broadcast %cst_36 : f32 to vector<8x128xf32>
    %83 = arith.select %81, %82, %77 : vector<8x128xi1>, vector<8x128xf32>
    %cst_37 = arith.constant dense<0xFF800000> : vector<8xf32>
    %84 = vector.multi_reduction <maximumf>, %83, %cst_37 [1] : vector<8x128xf32> to vector<8xf32>
    %85 = vector.shape_cast %84 : vector<8xf32> to vector<8x1xf32>
    %86 = vector.broadcast %85 : vector<8x1xf32> to vector<8x128xf32>
    %87 = arith.cmpf oge, %41, %86 : vector<8x128xf32>
    %cst_38 = arith.constant 0xFF800000 : f32
    %88 = vector.broadcast %cst_38 : f32 to vector<8x128xf32>
    %89 = arith.select %87, %41, %88 : vector<8x128xi1>, vector<8x128xf32>
    %90 = vector.broadcast %43 : vector<8x1xf32> to vector<8x128xf32>
    %91 = arith.subf %89, %90 : vector<8x128xf32>
    %92 = math.exp %91 : vector<8x128xf32>
    %c0_39 = arith.constant 0 : index
    %c0_40 = arith.constant 0 : index
    %93 = vector.load %arg8[%c0_39, %c0_40] : memref<128x2xf32, #tpu.memory_space<vmem>>, vector<128x2xf32>
    %cst_41 = arith.constant dense<0.000000e+00> : vector<8x2xf32>
    %94 = tpu.matmul %92, %93, %cst_41 {dimension_numbers = #tpu.dot_dimension_numbers<[1], [0], [0], [1], [0, 0, 1, 1], [], []>} : vector<8x128xf32>, vector<128x2xf32>, vector<8x2xf32> -> vector<8x2xf32>
    %cst_42 = arith.constant dense<0.000000e+00> : vector<8xf32>
    %95 = vector.multi_reduction <add>, %92, %cst_42 [1] : vector<8x128xf32> to vector<8xf32>
    %96 = vector.shape_cast %95 : vector<8xf32> to vector<8x1xf32>
    %97 = tpu.reciprocal %96 {approx = true} : vector<8x1xf32> -> vector<8x1xf32>
    %cst_43 = arith.constant 7.500000e-01 : f32
    %98 = vector.broadcast %cst_43 : f32 to vector<8x2xf32>
    %99 = arith.mulf %98, %36 : vector<8x2xf32>
    %100 = vector.broadcast %97 : vector<8x1xf32> to vector<8x2xf32>
    %101 = arith.mulf %94, %100 : vector<8x2xf32>
    %cst_44 = arith.constant 2.500000e-01 : f32
    %102 = vector.broadcast %cst_44 : f32 to vector<8x2xf32>
    %103 = arith.mulf %102, %101 : vector<8x2xf32>
    %104 = arith.addf %99, %103 : vector<8x2xf32>
    %c0_45 = arith.constant 0 : index
    %c0_46 = arith.constant 0 : index
    %105 = vector.load %arg10[%c0_45, %c0_46] : memref<1x2xf32, #tpu.memory_space<vmem>>, vector<1x2xf32>
    %106 = vector.broadcast %105 : vector<1x2xf32> to vector<8x2xf32>
    %107 = arith.addf %104, %106 : vector<8x2xf32>
    %c0_47 = arith.constant 0 : index
    %c0_48 = arith.constant 0 : index
    %108 = vector.load %arg11[%c0_47, %c0_48] : memref<8x2xf32, #tpu.memory_space<vmem>>, vector<8x2xf32>
    tpu.vector_store %arg11[%c0_47, %c0_48], %107 {strides = array<i32>} : memref<8x2xf32, #tpu.memory_space<vmem>>, vector<8x2xf32>,
    return
  }
  func.func @transform_0(%arg0: i32) -> (i32, i32) {
    %c0_i32 = arith.constant 0 : i32
    %c0_i32_0 = arith.constant 0 : i32
    return %arg0, %c0_i32 : i32, i32
  }
  func.func @transform_1(%arg0: i32) -> (i32, i32) {
    %c0_i32 = arith.constant 0 : i32
    %c0_i32_0 = arith.constant 0 : i32
    return %arg0, %c0_i32 : i32, i32
  }
  func.func @transform_2(%arg0: i32) -> (i32, i32) {
    %c0_i32 = arith.constant 0 : i32
    %c0_i32_0 = arith.constant 0 : i32
    %c0_i32_1 = arith.constant 0 : i32
    return %c0_i32, %c0_i32_0 : i32, i32
  }
  func.func @transform_3(%arg0: i32) -> (i32, i32) {
    %c0_i32 = arith.constant 0 : i32
    %c0_i32_0 = arith.constant 0 : i32
    %c0_i32_1 = arith.constant 0 : i32
    return %c0_i32, %c0_i32_0 : i32, i32
  }
  func.func @transform_4(%arg0: i32) -> (i32, i32) {
    %c0_i32 = arith.constant 0 : i32
    %c0_i32_0 = arith.constant 0 : i32
    %c0_i32_1 = arith.constant 0 : i32
    return %c0_i32, %c0_i32_0 : i32, i32
  }
  func.func @transform_5(%arg0: i32) -> (i32, i32) {
    %c0_i32 = arith.constant 0 : i32
    %c0_i32_0 = arith.constant 0 : i32
    %c0_i32_1 = arith.constant 0 : i32
    return %c0_i32, %c0_i32_0 : i32, i32
  }
  func.func @transform_6(%arg0: i32) -> (i32, i32) {
    %c0_i32 = arith.constant 0 : i32
    %c0_i32_0 = arith.constant 0 : i32
    %c0_i32_1 = arith.constant 0 : i32
    return %c0_i32, %c0_i32_0 : i32, i32
  }
  func.func @transform_7(%arg0: i32) -> (i32, i32) {
    %c0_i32 = arith.constant 0 : i32
    %c0_i32_0 = arith.constant 0 : i32
    %c0_i32_1 = arith.constant 0 : i32
    return %c0_i32, %c0_i32_0 : i32, i32
  }
  func.func @transform_8(%arg0: i32) -> (i32, i32) {
    %c0_i32 = arith.constant 0 : i32
    %c0_i32_0 = arith.constant 0 : i32
    %c0_i32_1 = arith.constant 0 : i32
    return %c0_i32, %c0_i32_0 : i32, i32
  }
  func.func @transform_9(%arg0: i32) -> (i32, i32) {
    %c0_i32 = arith.constant 0 : i32
    %c0_i32_0 = arith.constant 0 : i32
    %c0_i32_1 = arith.constant 0 : i32
    return %c0_i32, %c0_i32_0 : i32, i32
  }
  func.func @transform_10(%arg0: i32) -> (i32, i32) {
    %c0_i32 = arith.constant 0 : i32
    %c0_i32_0 = arith.constant 0 : i32
    return %arg0, %c0_i32 : i32, i32
  }
}

</mosaic_0001>

<llo_original>
// kernel: tpu_custom_call.1
$region0: #{tpu_custom_call.1}
  #allocation0 [shape = 'u32[]', space=smem, size = 0x4, offset = 0x4, fixed_abs, tag = 'smem constant byte address 0x4 - core index']
  #allocation1 [shape = 'u32[144,128]{1,0:T(1,128)}', space=vmem, size = 0x12000, scoped, tag = 'internal scratch']
  %s0 = inlined_call_operand.vmem [shape: s32[8,8], index: 0, kind: input, shape index: {}]
  %s1 = inlined_call_operand.vmem [shape: s32[8,8], index: 1, kind: input, shape index: {}]
  %s2 = inlined_call_operand.vmem [shape: f32[64,32], index: 2, kind: input, shape index: {}]
  %s3 = inlined_call_operand.vmem [shape: f32[32,32], index: 3, kind: input, shape index: {}]
  %s4 = inlined_call_operand.vmem [shape: f32[1,32], index: 4, kind: input, shape index: {}]
  %s5 = inlined_call_operand.vmem [shape: f32[32,128], index: 5, kind: input, shape index: {}]
  %s6 = inlined_call_operand.vmem [shape: f32[1,128], index: 6, kind: input, shape index: {}]
  %s7 = inlined_call_operand.vmem [shape: f32[128,2], index: 7, kind: input, shape index: {}]
  %s8 = inlined_call_operand.vmem [shape: f32[32,2], index: 8, kind: input, shape index: {}]
  %s9 = inlined_call_operand.vmem [shape: f32[1,2], index: 9, kind: input, shape index: {}]
  %s10 = inlined_call_operand.vmem [shape: f32[8,2], index: 10, kind: output, shape index: {}]
  %s11 = sld [smem:[#allocation0]]
  $region50: #{tpu_custom_call.1} parent=0
    _
  %s13 = ssub.s32 1, %s11
  %s14 = scalar_select 0, %s13, %s11
  // Predicated region
  $region2: #{tpu_custom_call.1} parent=0 // pred_check
    _
  $region3: #{tpu_custom_call.1} parent=0 // pred_check_branch
    %16 = sbr.rel (0) target = $region5
  $region4: #{tpu_custom_call.1} parent=0 // pred_region
    _
  $region5: #{tpu_custom_call.1} parent=0 // pred_fallthru
    _
  // Predicated region
  $region6: #{tpu_custom_call.1} parent=0 // pred_check
    _
  $region7: #{tpu_custom_call.1} parent=0 // pred_check_branch
    %18 = sbr.rel (0) target = $region9
  $region8: #{tpu_custom_call.1} parent=0 // pred_region
    _
  $region9: #{tpu_custom_call.1} parent=0 // pred_fallthru
    _
  // Predicated region
  $region10: #{tpu_custom_call.1} parent=0 // pred_check
    _
  $region11: #{tpu_custom_call.1} parent=0 // pred_check_branch
    %20 = sbr.rel (0) target = $region13
  $region12: #{tpu_custom_call.1} parent=0 // pred_region
    _
  $region13: #{tpu_custom_call.1} parent=0 // pred_fallthru
    _
  // Predicated region
  $region14: #{tpu_custom_call.1} parent=0 // pred_check
    _
  $region15: #{tpu_custom_call.1} parent=0 // pred_check_branch
    %22 = sbr.rel (0) target = $region17
  $region16: #{tpu_custom_call.1} parent=0 // pred_region
    _
  $region17: #{tpu_custom_call.1} parent=0 // pred_fallthru
    _
  // Predicated region
  $region18: #{tpu_custom_call.1} parent=0 // pred_check
    _
  $region19: #{tpu_custom_call.1} parent=0 // pred_check_branch
    %24 = sbr.rel (0) target = $region21
  $region20: #{tpu_custom_call.1} parent=0 // pred_region
    _
  $region21: #{tpu_custom_call.1} parent=0 // pred_fallthru
    _
  // Predicated region
  $region22: #{tpu_custom_call.1} parent=0 // pred_check
    _
  $region23: #{tpu_custom_call.1} parent=0 // pred_check_branch
    %26 = sbr.rel (0) target = $region25
  $region24: #{tpu_custom_call.1} parent=0 // pred_region
    _
  $region25: #{tpu_custom_call.1} parent=0 // pred_fallthru
    _
  // Predicated region
  $region26: #{tpu_custom_call.1} parent=0 // pred_check
    _
  $region27: #{tpu_custom_call.1} parent=0 // pred_check_branch
    %28 = sbr.rel (0) target = $region29
  $region28: #{tpu_custom_call.1} parent=0 // pred_region
    _
  $region29: #{tpu_custom_call.1} parent=0 // pred_fallthru
    _
  // Predicated region
  $region30: #{tpu_custom_call.1} parent=0 // pred_check
    _
  $region31: #{tpu_custom_call.1} parent=0 // pred_check_branch
    %30 = sbr.rel (0) target = $region33
  $region32: #{tpu_custom_call.1} parent=0 // pred_region
    _
  $region33: #{tpu_custom_call.1} parent=0 // pred_fallthru
    _
  // Predicated region
  $region34: #{tpu_custom_call.1} parent=0 // pred_check
    _
  $region35: #{tpu_custom_call.1} parent=0 // pred_check_branch
    %32 = sbr.rel (0) target = $region37
  $region36: #{tpu_custom_call.1} parent=0 // pred_region
    _
  $region37: #{tpu_custom_call.1} parent=0 // pred_fallthru
    _
  // Predicated region
  $region38: #{tpu_custom_call.1} parent=0 // pred_check
    _
  $region39: #{tpu_custom_call.1} parent=0 // pred_check_branch
    %34 = sbr.rel (0) target = $region41
  $region40: #{tpu_custom_call.1} parent=0 // pred_region
    _
  $region41: #{tpu_custom_call.1} parent=0 // pred_fallthru
    _
  %v35 = vld [vmem:[%s1] sm:$0xff]
  %v36 = vcvt.s32.f32 %v35
  %vm37 = vcmask 64512
  %v38 = vsel %vm37, %v36, 0.0
  %39 = vadd.xlane.f32.xlu0 %v38
  %v40 = vpop.xlane.xlu0 %39
  %vm41 = vcmp.gt.f32.partialorder %v40, 0.5
  %v42 = vsub.f32 %v40, 1.0
  %v43 = vsel %vm41, %v42, 7.0
  %v44 = vlaneseq
  %v45 = vand.u32 %v44, 127
  %v46 = vcvt.s32.f32 %v45
  %vm47 = vcmp.eq.f32.partialorder %v46, %v43
  %v48 = vsel %vm47, 1, 0
  %v49 = vcvt.s32.f32 %v48
  %v50 = vld [vmem:[%s0] sm:$0xff]
  %v51 = vcvt.s32.f32 %v50
  %v52 = vmul.f32 %v51, %v49
  %v53 = vsel %vm37, %v52, 0.0
  %54 = vadd.xlane.f32.xlu0 %v53
  %v55 = vpop.xlane.xlu0 %54
  %vm56 = vcmp.eq.f32.partialorder %v46, %v55
  %v57 = vsel %vm56, 1, 0
  %v58 = vcvt.s32.f32 %v57
  %v59 = vld [vmem:[%s2] sm:$0xff]
  %v60 = vld [vmem:[%s2 + $0x8] sm:$0xff]
  %v61 = vld [vmem:[%s2 + $0x10] sm:$0xff]
  %v62 = vld [vmem:[%s2 + $0x18] sm:$0xff]
  %v63 = vld [vmem:[%s2 + $0x20] sm:$0xff]
  %v64 = vld [vmem:[%s2 + $0x28] sm:$0xff]
  %v65 = vld [vmem:[%s2 + $0x30] sm:$0xff]
  %v66 = vld [vmem:[%s2 + $0x38] sm:$0xff]
  %vm67 = vcmask 523264
  %v69 = vsel %vm67, %v58, 0
  %71 = vmatprep.subr.mxu0 0.0
  %72 = vmatpush1.msra.mxu0 %v59
  %73 = vmatprep.subr.mxu0 0.0
  %74 = vmatpush1.msra.mxu0 %v60
  %75 = vmatprep.subr.mxu0 0.0
  %76 = vmatpush1.msra.mxu0 %v61
  %77 = vmatprep.subr.mxu0 0.0
  %78 = vmatpush1.msra.mxu0 %v62
  %79 = vmatprep.subr.mxu0 0.0
  %80 = vmatpush1.msra.mxu0 %v63
  %81 = vmatprep.subr.mxu0 0.0
  %82 = vmatpush1.msra.mxu0 %v64
  %83 = vmatprep.subr.mxu0 0.0
  %84 = vmatpush1.msra.mxu0 %v65
  %85 = vmatprep.subr.mxu0 0.0
  %86 = vmatpush1.msra.mxu0 %v66
  %87 = vmatprep.subr.mxu0 0.0
  %88 = vmatpush1.msra.mxu0 0.0
  %89 = vmatprep.subr.mxu0 0.0
  %90 = vmatpush1.msra.mxu0 0.0
  %91 = vmatprep.subr.mxu0 0.0
  %92 = vmatpush1.msra.mxu0 0.0
  %93 = vmatprep.subr.mxu0 0.0
  %94 = vmatpush1.msra.mxu0 0.0
  %95 = vmatprep.subr.mxu0 0.0
  %96 = vmatpush1.msra.mxu0 0.0
  %97 = vmatprep.subr.mxu0 0.0
  %98 = vmatpush1.msra.mxu0 0.0
  %99 = vmatprep.subr.mxu0 0.0
  %100 = vmatpush1.msra.mxu0 0.0
  %101 = vmatprep.subr.mxu0 0.0
  %102 = vmatpush1.msra.mxu0 0.0
  %103 = vmatprep.subr.mxu0 0.0
  %104 = vmatpush1.msra.mxu0 0.0
  %105 = vmatprep.subr.mxu0 0.0
  %106 = vmatpush1.msra.mxu0 0.0
  %107 = vmatprep.subr.mxu0 0.0
  %108 = vmatpush1.msra.mxu0 0.0
  %109 = vmatprep.subr.mxu0 0.0
  %110 = vmatpush1.msra.mxu0 0.0
  %111 = vmatprep.subr.mxu0 0.0
  %112 = vmatpush1.msra.mxu0 0.0
  %113 = vmatprep.subr.mxu0 0.0
  %114 = vmatpush1.msra.mxu0 0.0
  %115 = vmatprep.subr.mxu0 0.0
  %116 = vmatpush1.msra.mxu0 0.0
  %117 = vmatprep.subr.mxu0 0.0
  %118 = vmatpush1.msra.mxu0 0.0
  %119 = vmatprep.subr.mxu0 0.0
  %120 = vmatpush1.msra.mxu0 0.0
  %121 = vmatprep.subr.mxu0 0.0
  %122 = vmatpush1.msra.mxu0 0.0
  %123 = vmatprep.subr.mxu0 0.0
  %124 = vmatpush1.msra.mxu0 0.0
  %125 = vmatprep.subr.mxu0 0.0
  %126 = vmatpush1.msra.mxu0 0.0
  %127 = vmatprep.subr.mxu0 0.0
  %128 = vmatpush1.msra.mxu0 0.0
  %129 = vmatprep.subr.mxu0 0.0
  %130 = vmatpush1.msra.mxu0 0.0
  %131 = vmatprep.subr.mxu0 0.0
  %132 = vmatpush1.msra.mxu0 0.0
  %133 = vmatprep.subr.mxu0 0.0
  %134 = vmatpush1.msra.mxu0 0.0
  %135 = vmatprep.mubr.f32.mxu0 0.0
  %136 = vmatmul.mubr.f32.gmra.mrb[0].mxu0 %v69
  %v137 = vpop.f32.mrb[0].mxu0
  %v138 = vadd.f32 0.0, %v137
  %v139 = vpop.f32.mrb[0].mxu0
  %140 = vdwg.mxu0
  %v141 = vld [vmem:[%s3] sm:$0xff]
  %v142 = vld [vmem:[%s3 + $0x8] sm:$0xff]
  %v143 = vld [vmem:[%s3 + $0x10] sm:$0xff]
  %v144 = vld [vmem:[%s3 + $0x18] sm:$0xff]
  %v145 = vld [vmem:[%s4] sm:$0x1]
  %v147 = vlaneseq
  %v148 = vshrl.u32 %v147, 7
  %v149 = vsub.s32 0, %v148
  %v150 = vrot.slane %v145, %v149
  %vm152 = vcmask 261120
  %v154 = vsel %vm152, %v138, 0
  %156 = vmatprep.subr.mxu0 0.0
  %157 = vmatpush1.msra.mxu0 %v141
  %158 = vmatprep.subr.mxu0 0.0
  %159 = vmatpush1.msra.mxu0 %v142
  %160 = vmatprep.subr.mxu0 0.0
  %161 = vmatpush1.msra.mxu0 %v143
  %162 = vmatprep.subr.mxu0 0.0
  %163 = vmatpush1.msra.mxu0 %v144
  %164 = vmatprep.subr.mxu0 0.0
  %165 = vmatpush1.msra.mxu0 0.0
  %166 = vmatprep.subr.mxu0 0.0
  %167 = vmatpush1.msra.mxu0 0.0
  %168 = vmatprep.subr.mxu0 0.0
  %169 = vmatpush1.msra.mxu0 0.0
  %170 = vmatprep.subr.mxu0 0.0
  %171 = vmatpush1.msra.mxu0 0.0
  %172 = vmatprep.subr.mxu0 0.0
  %173 = vmatpush1.msra.mxu0 0.0
  %174 = vmatprep.subr.mxu0 0.0
  %175 = vmatpush1.msra.mxu0 0.0
  %176 = vmatprep.subr.mxu0 0.0
  %177 = vmatpush1.msra.mxu0 0.0
  %178 = vmatprep.subr.mxu0 0.0
  %179 = vmatpush1.msra.mxu0 0.0
  %180 = vmatprep.subr.mxu0 0.0
  %181 = vmatpush1.msra.mxu0 0.0
  %182 = vmatprep.subr.mxu0 0.0
  %183 = vmatpush1.msra.mxu0 0.0
  %184 = vmatprep.subr.mxu0 0.0
  %185 = vmatpush1.msra.mxu0 0.0
  %186 = vmatprep.subr.mxu0 0.0
  %187 = vmatpush1.msra.mxu0 0.0
  %188 = vmatprep.subr.mxu0 0.0
  %189 = vmatpush1.msra.mxu0 0.0
  %190 = vmatprep.subr.mxu0 0.0
  %191 = vmatpush1.msra.mxu0 0.0
  %192 = vmatprep.subr.mxu0 0.0
  %193 = vmatpush1.msra.mxu0 0.0
  %194 = vmatprep.subr.mxu0 0.0
  %195 = vmatpush1.msra.mxu0 0.0
  %196 = vmatprep.subr.mxu0 0.0
  %197 = vmatpush1.msra.mxu0 0.0
  %198 = vmatprep.subr.mxu0 0.0
  %199 = vmatpush1.msra.mxu0 0.0
  %200 = vmatprep.subr.mxu0 0.0
  %201 = vmatpush1.msra.mxu0 0.0
  %202 = vmatprep.subr.mxu0 0.0
  %203 = vmatpush1.msra.mxu0 0.0
  %204 = vmatprep.subr.mxu0 0.0
  %205 = vmatpush1.msra.mxu0 0.0
  %206 = vmatprep.subr.mxu0 0.0
  %207 = vmatpush1.msra.mxu0 0.0
  %208 = vmatprep.subr.mxu0 0.0
  %209 = vmatpush1.msra.mxu0 0.0
  %210 = vmatprep.subr.mxu0 0.0
  %211 = vmatpush1.msra.mxu0 0.0
  %212 = vmatprep.subr.mxu0 0.0
  %213 = vmatpush1.msra.mxu0 0.0
  %214 = vmatprep.subr.mxu0 0.0
  %215 = vmatpush1.msra.mxu0 0.0
  %216 = vmatprep.subr.mxu0 0.0
  %217 = vmatpush1.msra.mxu0 0.0
  %218 = vmatprep.subr.mxu0 0.0
  %219 = vmatpush1.msra.mxu0 0.0
  %220 = vmatprep.mubr.f32.mxu0 0.0
  %221 = vmatmul.mubr.f32.gmra.mrb[0].mxu0 %v154
  %v222 = vpop.f32.mrb[0].mxu0
  %v223 = vadd.f32 %v150, %v222
  %v224 = vpop.f32.mrb[0].mxu0
  %225 = vdwg.mxu0
  %v226 = vtanh.pop %v223
  %v227 = vld [vmem:[%s8] sm:$0xff]
  %v228 = vld [vmem:[%s8 + $0x8] sm:$0xff]
  %v229 = vld [vmem:[%s8 + $0x10] sm:$0xff]
  %v230 = vld [vmem:[%s8 + $0x18] sm:$0xff]
  %v232 = vsel %vm152, %v226, 0
  %234 = vmatprep.subr.mxu0 0.0
  %235 = vmatpush1.msra.mxu0 %v227
  %236 = vmatprep.subr.mxu0 0.0
  %237 = vmatpush1.msra.mxu0 %v228
  %238 = vmatprep.subr.mxu0 0.0
  %239 = vmatpush1.msra.mxu0 %v229
  %240 = vmatprep.subr.mxu0 0.0
  %241 = vmatpush1.msra.mxu0 %v230
  %242 = vmatprep.subr.mxu0 0.0
  %243 = vmatpush1.msra.mxu0 0.0
  %244 = vmatprep.subr.mxu0 0.0
  %245 = vmatpush1.msra.mxu0 0.0
  %246 = vmatprep.subr.mxu0 0.0
  %247 = vmatpush1.msra.mxu0 0.0
  %248 = vmatprep.subr.mxu0 0.0
  %249 = vmatpush1.msra.mxu0 0.0
  %250 = vmatprep.subr.mxu0 0.0
  %251 = vmatpush1.msra.mxu0 0.0
  %252 = vmatprep.subr.mxu0 0.0
  %253 = vmatpush1.msra.mxu0 0.0
  %254 = vmatprep.subr.mxu0 0.0
  %255 = vmatpush1.msra.mxu0 0.0
  %256 = vmatprep.subr.mxu0 0.0
  %257 = vmatpush1.msra.mxu0 0.0
  %258 = vmatprep.subr.mxu0 0.0
  %259 = vmatpush1.msra.mxu0 0.0
  %260 = vmatprep.subr.mxu0 0.0
  %261 = vmatpush1.msra.mxu0 0.0
  %262 = vmatprep.subr.mxu0 0.0
  %263 = vmatpush1.msra.mxu0 0.0
  %264 = vmatprep.subr.mxu0 0.0
  %265 = vmatpush1.msra.mxu0 0.0
  %266 = vmatprep.subr.mxu0 0.0
  %267 = vmatpush1.msra.mxu0 0.0
  %268 = vmatprep.subr.mxu0 0.0
  %269 = vmatpush1.msra.mxu0 0.0
  %270 = vmatprep.subr.mxu0 0.0
  %271 = vmatpush1.msra.mxu0 0.0
  %272 = vmatprep.subr.mxu0 0.0
  %273 = vmatpush1.msra.mxu0 0.0
  %274 = vmatprep.subr.mxu0 0.0
  %275 = vmatpush1.msra.mxu0 0.0
  %276 = vmatprep.subr.mxu0 0.0
  %277 = vmatpush1.msra.mxu0 0.0
  %278 = vmatprep.subr.mxu0 0.0
  %279 = vmatpush1.msra.mxu0 0.0
  %280 = vmatprep.subr.mxu0 0.0
  %281 = vmatpush1.msra.mxu0 0.0
  %282 = vmatprep.subr.mxu0 0.0
  %283 = vmatpush1.msra.mxu0 0.0
  %284 = vmatprep.subr.mxu0 0.0
  %285 = vmatpush1.msra.mxu0 0.0
  %286 = vmatprep.subr.mxu0 0.0
  %287 = vmatpush1.msra.mxu0 0.0
  %288 = vmatprep.subr.mxu0 0.0
  %289 = vmatpush1.msra.mxu0 0.0
  %290 = vmatprep.subr.mxu0 0.0
  %291 = vmatpush1.msra.mxu0 0.0
  %292 = vmatprep.subr.mxu0 0.0
  %293 = vmatpush1.msra.mxu0 0.0
  %294 = vmatprep.subr.mxu0 0.0
  %295 = vmatpush1.msra.mxu0 0.0
  %296 = vmatprep.subr.mxu0 0.0
  %297 = vmatpush1.msra.mxu0 0.0
  %298 = vmatprep.mubr.f32.mxu0 0.0
  %299 = vmatmul.mubr.f32.gmra.mrb[0].mxu0 %v232
  %v300 = vpop.f32.mrb[0].mxu0
  %v301 = vadd.f32 0.0, %v300
  %v302 = vpop.f32.mrb[0].mxu0
  %303 = vdwg.mxu0
  %v304 = vld [vmem:[%s5] sm:$0xff]
  %v305 = vld [vmem:[%s5 + $0x8] sm:$0xff]
  %v306 = vld [vmem:[%s5 + $0x10] sm:$0xff]
  %v307 = vld [vmem:[%s5 + $0x18] sm:$0xff]
  %308 = vmatprep.subr.mxu0 0.0
  %309 = vmatpush1.msra.mxu0 %v304
  %310 = vmatprep.subr.mxu0 0.0
  %311 = vmatpush1.msra.mxu0 %v305
  %312 = vmatprep.subr.mxu0 0.0
  %313 = vmatpush1.msra.mxu0 %v306
  %314 = vmatprep.subr.mxu0 0.0
  %315 = vmatpush1.msra.mxu0 %v307
  %316 = vmatprep.subr.mxu0 0.0
  %317 = vmatpush1.msra.mxu0 0.0
  %318 = vmatprep.subr.mxu0 0.0
  %319 = vmatpush1.msra.mxu0 0.0
  %320 = vmatprep.subr.mxu0 0.0
  %321 = vmatpush1.msra.mxu0 0.0
  %322 = vmatprep.subr.mxu0 0.0
  %323 = vmatpush1.msra.mxu0 0.0
  %324 = vmatprep.subr.mxu0 0.0
  %325 = vmatpush1.msra.mxu0 0.0
  %326 = vmatprep.subr.mxu0 0.0
  %327 = vmatpush1.msra.mxu0 0.0
  %328 = vmatprep.subr.mxu0 0.0
  %329 = vmatpush1.msra.mxu0 0.0
  %330 = vmatprep.subr.mxu0 0.0
  %331 = vmatpush1.msra.mxu0 0.0
  %332 = vmatprep.subr.mxu0 0.0
  %333 = vmatpush1.msra.mxu0 0.0
  %334 = vmatprep.subr.mxu0 0.0
  %335 = vmatpush1.msra.mxu0 0.0
  %336 = vmatprep.subr.mxu0 0.0
  %337 = vmatpush1.msra.mxu0 0.0
  %338 = vmatprep.subr.mxu0 0.0
  %339 = vmatpush1.msra.mxu0 0.0
  %340 = vmatprep.subr.mxu0 0.0
  %341 = vmatpush1.msra.mxu0 0.0
  %342 = vmatprep.subr.mxu0 0.0
  %343 = vmatpush1.msra.mxu0 0.0
  %344 = vmatprep.subr.mxu0 0.0
  %345 = vmatpush1.msra.mxu0 0.0
  %346 = vmatprep.subr.mxu0 0.0
  %347 = vmatpush1.msra.mxu0 0.0
  %348 = vmatprep.subr.mxu0 0.0
  %349 = vmatpush1.msra.mxu0 0.0
  %350 = vmatprep.subr.mxu0 0.0
  %351 = vmatpush1.msra.mxu0 0.0
  %352 = vmatprep.subr.mxu0 0.0
  %353 = vmatpush1.msra.mxu0 0.0
  %354 = vmatprep.subr.mxu0 0.0
  %355 = vmatpush1.msra.mxu0 0.0
  %356 = vmatprep.subr.mxu0 0.0
  %357 = vmatpush1.msra.mxu0 0.0
  %358 = vmatprep.subr.mxu0 0.0
  %359 = vmatpush1.msra.mxu0 0.0
  %360 = vmatprep.subr.mxu0 0.0
  %361 = vmatpush1.msra.mxu0 0.0
  %362 = vmatprep.subr.mxu0 0.0
  %363 = vmatpush1.msra.mxu0 0.0
  %364 = vmatprep.subr.mxu0 0.0
  %365 = vmatpush1.msra.mxu0 0.0
  %366 = vmatprep.subr.mxu0 0.0
  %367 = vmatpush1.msra.mxu0 0.0
  %368 = vmatprep.subr.mxu0 0.0
  %369 = vmatpush1.msra.mxu0 0.0
  %370 = vmatprep.subr.mxu0 0.0
  %371 = vmatpush1.msra.mxu0 0.0
  %372 = vmatprep.mubr.f32.mxu0 0.0
  %373 = vmatmul.mubr.f32.gmra.mrb[0].mxu0 %v232
  %v374 = vpop.f32.mrb[0].mxu0
  %v375 = vadd.f32 0.0, %v374
  %v376 = vpop.f32.mrb[0].mxu0
  %377 = vdwg.mxu0
  %v378 = vld [vmem:[%s6] sm:$0x1]
  %v380 = vlaneseq
  %v381 = vshrl.u32 %v380, 7
  %v382 = vsub.s32 0, %v381
  %v383 = vrot.slane %v378, %v382
  %v385 = vsub.f32 %v375, %v383
  %386 = vmax.xlane.f32.xlu0 %v385
  %v387 = vpop.xlane.xlu0 %386
  %vm388 = vcmp.ge.f32.partialorder %v385, %v387
  %v389 = vsel %vm388, -inf, %v385
  %390 = vmax.xlane.f32.xlu0 %v389
  %v391 = vpop.xlane.xlu0 %390
  %vm392 = vcmp.ge.f32.partialorder %v389, %v391
  %v393 = vsel %vm392, -inf, %v389
  %394 = vmax.xlane.f32.xlu0 %v393
  %v395 = vpop.xlane.xlu0 %394
  %vm396 = vcmp.ge.f32.partialorder %v393, %v395
  %v397 = vsel %vm396, -inf, %v393
  %398 = vmax.xlane.f32.xlu0 %v397
  %v399 = vpop.xlane.xlu0 %398
  %vm400 = vcmp.ge.f32.partialorder %v397, %v399
  %v401 = vsel %vm400, -inf, %v397
  %402 = vmax.xlane.f32.xlu0 %v401
  %v403 = vpop.xlane.xlu0 %402
  %vm404 = vcmp.ge.f32.partialorder %v401, %v403
  %v405 = vsel %vm404, -inf, %v401
  %406 = vmax.xlane.f32.xlu0 %v405
  %v407 = vpop.xlane.xlu0 %406
  %vm408 = vcmp.ge.f32.partialorder %v405, %v407
  %v409 = vsel %vm408, -inf, %v405
  %410 = vmax.xlane.f32.xlu0 %v409
  %v411 = vpop.xlane.xlu0 %410
  %vm412 = vcmp.ge.f32.partialorder %v409, %v411
  %v413 = vsel %vm412, -inf, %v409
  %414 = vmax.xlane.f32.xlu0 %v413
  %v415 = vpop.xlane.xlu0 %414
  %vm416 = vcmp.ge.f32.partialorder %v385, %v415
  %v417 = vsel %vm416, %v385, -inf
  %v418 = vsub.f32 %v417, %v387
  %v419 = vmul.f32 %v418, 1.442695
  %v420 = vpow.pop %v419
  %v421 = vld [vmem:[%s7] sm:$0xff]
  %v422 = vld [vmem:[%s7 + $0x8] sm:$0xff]
  %v423 = vld [vmem:[%s7 + $0x10] sm:$0xff]
  %v424 = vld [vmem:[%s7 + $0x18] sm:$0xff]
  %v425 = vld [vmem:[%s7 + $0x20] sm:$0xff]
  %v426 = vld [vmem:[%s7 + $0x28] sm:$0xff]
  %v427 = vld [vmem:[%s7 + $0x30] sm:$0xff]
  %v428 = vld [vmem:[%s7 + $0x38] sm:$0xff]
  %v429 = vld [vmem:[%s7 + $0x40] sm:$0xff]
  %v430 = vld [vmem:[%s7 + $0x48] sm:$0xff]
  %v431 = vld [vmem:[%s7 + $0x50] sm:$0xff]
  %v432 = vld [vmem:[%s7 + $0x58] sm:$0xff]
  %v433 = vld [vmem:[%s7 + $0x60] sm:$0xff]
  %v434 = vld [vmem:[%s7 + $0x68] sm:$0xff]
  %v435 = vld [vmem:[%s7 + $0x70] sm:$0xff]
  %v436 = vld [vmem:[%s7 + $0x78] sm:$0xff]
  %437 = vmatprep.subr.mxu0 0.0
  %438 = vmatpush1.msra.mxu0 %v421
  %439 = vmatprep.subr.mxu0 0.0
  %440 = vmatpush1.msra.mxu0 %v422
  %441 = vmatprep.subr.mxu0 0.0
  %442 = vmatpush1.msra.mxu0 %v423
  %443 = vmatprep.subr.mxu0 0.0
  %444 = vmatpush1.msra.mxu0 %v424
  %445 = vmatprep.subr.mxu0 0.0
  %446 = vmatpush1.msra.mxu0 %v425
  %447 = vmatprep.subr.mxu0 0.0
  %448 = vmatpush1.msra.mxu0 %v426
  %449 = vmatprep.subr.mxu0 0.0
  %450 = vmatpush1.msra.mxu0 %v427
  %451 = vmatprep.subr.mxu0 0.0
  %452 = vmatpush1.msra.mxu0 %v428
  %453 = vmatprep.subr.mxu0 0.0
  %454 = vmatpush1.msra.mxu0 %v429
  %455 = vmatprep.subr.mxu0 0.0
  %456 = vmatpush1.msra.mxu0 %v430
  %457 = vmatprep.subr.mxu0 0.0
  %458 = vmatpush1.msra.mxu0 %v431
  %459 = vmatprep.subr.mxu0 0.0
  %460 = vmatpush1.msra.mxu0 %v432
  %461 = vmatprep.subr.mxu0 0.0
  %462 = vmatpush1.msra.mxu0 %v433
  %463 = vmatprep.subr.mxu0 0.0
  %464 = vmatpush1.msra.mxu0 %v434
  %465 = vmatprep.subr.mxu0 0.0
  %466 = vmatpush1.msra.mxu0 %v435
  %467 = vmatprep.subr.mxu0 0.0
  %468 = vmatpush1.msra.mxu0 %v436
  %469 = vmatprep.subr.mxu0 0.0
  %470 = vmatpush1.msra.mxu0 0.0
  %471 = vmatprep.subr.mxu0 0.0
  %472 = vmatpush1.msra.mxu0 0.0
  %473 = vmatprep.subr.mxu0 0.0
  %474 = vmatpush1.msra.mxu0 0.0
  %475 = vmatprep.subr.mxu0 0.0
  %476 = vmatpush1.msra.mxu0 0.0
  %477 = vmatprep.subr.mxu0 0.0
  %478 = vmatpush1.msra.mxu0 0.0
  %479 = vmatprep.subr.mxu0 0.0
  %480 = vmatpush1.msra.mxu0 0.0
  %481 = vmatprep.subr.mxu0 0.0
  %482 = vmatpush1.msra.mxu0 0.0
  %483 = vmatprep.subr.mxu0 0.0
  %484 = vmatpush1.msra.mxu0 0.0
  %485 = vmatprep.subr.mxu0 0.0
  %486 = vmatpush1.msra.mxu0 0.0
  %487 = vmatprep.subr.mxu0 0.0
  %488 = vmatpush1.msra.mxu0 0.0
  %489 = vmatprep.subr.mxu0 0.0
  %490 = vmatpush1.msra.mxu0 0.0
  %491 = vmatprep.subr.mxu0 0.0
  %492 = vmatpush1.msra.mxu0 0.0
  %493 = vmatprep.subr.mxu0 0.0
  %494 = vmatpush1.msra.mxu0 0.0
  %495 = vmatprep.subr.mxu0 0.0
  %496 = vmatpush1.msra.mxu0 0.0
  %497 = vmatprep.subr.mxu0 0.0
  %498 = vmatpush1.msra.mxu0 0.0
  %499 = vmatprep.subr.mxu0 0.0
  %500 = vmatpush1.msra.mxu0 0.0
  %501 = vmatprep.mubr.f32.mxu0 0.0
  %502 = vmatmul.mubr.f32.gmra.mrb[0].mxu0 %v420
  %v503 = vpop.f32.mrb[0].mxu0
  %v504 = vadd.f32 0.0, %v503
  %v505 = vpop.f32.mrb[0].mxu0
  %506 = vdwg.mxu0
  %507 = vadd.xlane.f32.xlu0 %v420
  %v508 = vpop.xlane.xlu0 %507
  %v509 = vrcp.pop %v508
  %v510 = vmul.f32 %v301, 0.75
  %v511 = vmul.f32 %v504, %v509
  %v512 = vmul.f32 %v511, 0.25
  %v513 = vadd.f32 %v510, %v512
  %v514 = vld [vmem:[%s9] sm:$0x1]
  %v516 = vlaneseq
  %v517 = vshrl.u32 %v516, 7
  %v518 = vsub.s32 0, %v517
  %v519 = vrot.slane %v514, %v518
  %v521 = vadd.f32 %v513, %v519
  %vm522 = vcmask 15360
  %523 = vst.msk [vmem:[%s10] sm:$0xff] %vm522, %v521
  // Predicated region
  $region42: #{tpu_custom_call.1} parent=0 // pred_check
    _
  $region43: #{tpu_custom_call.1} parent=0 // pred_check_branch
    %525 = sbr.rel (0) target = $region45
  $region44: #{tpu_custom_call.1} parent=0 // pred_region
    _
  $region45: #{tpu_custom_call.1} parent=0 // pred_fallthru
    _
  // Predicated region
  $region46: #{tpu_custom_call.1} parent=0 // pred_check
    _
  $region47: #{tpu_custom_call.1} parent=0 // pred_check_branch
    %527 = sbr.rel (0) target = $region49
  $region48: #{tpu_custom_call.1} parent=0 // pred_region
    _
  $region49: #{tpu_custom_call.1} parent=0 // pred_fallthru
    _

</llo_original>
